<compile_context>
chip_gen: v7x
topology: tpu7x:2x2x1
jax: 0.10.0
libtpu: 0.0.40
codegen_flags: <defaults>
</compile_context>

<pallas_src>
import functools
import math

import jax
import jax.numpy as jnp
from jax.experimental import pallas as pl
from jax.experimental.pallas import tpu as pltpu

LANE = 128
SUBLANE = 8
TILE_M_MAX = 512  # large-batch row tile (512-1024 amortizes per-step overhead)


def _round_up(x, m):
    return ((x + m - 1) // m) * m


# ---------------------------------------------------------------------------
# Fused Pallas kernel: whole MLP in one body
# ---------------------------------------------------------------------------
def _fcnet_fused_kernel(*refs, n_layers: int, use_bf16: bool):
    # refs = (x_ref, w1_ref, b1_ref, ..., wL_ref, bL_ref, o_ref)
    #   x_ref : (bm, in_dim) float32   activations tile (cast in-kernel)
    #   wi_ref: (Ki, Ni)               full weight resident in VMEM
    #   bi_ref: (1, Ni)   float32      bias (one broadcast per layer)
    #   o_ref : (bm, N_out_pad)        logits tile (lane-dense, 128 cols)
    x_ref = refs[0]
    o_ref = refs[-1]
    wb = refs[1:-1]

    h = x_ref[...]
    for li in range(n_layers):
        w = wb[2 * li][...]
        b = wb[2 * li + 1][...]  # (1, N) f32
        lhs = h.astype(jnp.bfloat16) if use_bf16 else h.astype(jnp.float32)
        # MXU matmul, f32 accumulation regardless of operand dtype.
        y = jnp.dot(lhs, w, preferred_element_type=jnp.float32) + b
        if li != n_layers - 1:
            y = jnp.maximum(y, 0.0)  # ReLU in f32 (VPU-safe on v5e)
        h = y
    o_ref[...] = h.astype(o_ref.dtype)


# ---------------------------------------------------------------------------
# FCNet in JAX, hot path in a single Pallas kernel
# ---------------------------------------------------------------------------
def init_fcnet_params(key, in_dim=28 * 28, hidden_dim=128, n_hidden=2, out_dim=10):
    """PyTorch-style (uniform +/- 1/sqrt(fan_in)) init.

    Weights are stored already transposed: (fan_in, fan_out) == torch_weight.T.
    """
    dims = [in_dim] + [hidden_dim] * (n_hidden + 1) + [out_dim]
    params = []
    for i in range(len(dims) - 1):
        fan_in, fan_out = dims[i], dims[i + 1]
        key, kw, kb = jax.random.split(key, 3)
        bound = 1.0 / math.sqrt(fan_in)
        w_t = jax.random.uniform(kw, (fan_in, fan_out), jnp.float32, -bound, bound)
        b = jax.random.uniform(kb, (1, fan_out), jnp.float32, -bound, bound)
        params.append((w_t, b))
    return params


def fcnet_forward_pallas(x_nchw, params, *, use_bf16: bool = True):
    """Equivalent to FCNet.forward(x) with weights_and_biases=None."""
    B = x_nchw.shape[0]
    x = x_nchw.reshape(B, -1)  # flatten(start_dim=1); no pad, no dtype pass
    if x.dtype != jnp.float32:
        x = x.astype(jnp.float32)
    in_dim = x.shape[1]
    n_layers = len(params)
    out_dim = params[-1][0].shape[1]

    operand_dtype = jnp.bfloat16 if use_bf16 else jnp.float32

    # ---- only the LAST layer's N is padded (lane-dense output writeback) ---
    out_pad = _round_up(out_dim, LANE)
    prepped = []
    for li, (w_t, b) in enumerate(params):
        k, n = w_t.shape
        n_p = out_pad if li == n_layers - 1 else n
        if n_p != n:
            w_t = jnp.zeros((k, n_p), jnp.float32).at[:, :n].set(w_t)
            b = jnp.zeros((1, n_p), jnp.float32).at[:, :n].set(b)
        prepped.append((w_t.astype(operand_dtype), b.astype(jnp.float32)))

    # ---- batch tiling -------------------------------------------------------
    # B <= 8           : single tiny tile
    # 8 < B <= 2*512   : split into (at least) 2 parallel tiles -> both v7x TCs
    # larger B         : 512-row tiles (amortizes ~0.35 us per-step overhead)
    if B <= SUBLANE:
        bm = _round_up(B, SUBLANE)
    else:
        bm = min(TILE_M_MAX, _round_up(pl.cdiv(B, 2), SUBLANE))
    B_pad = _round_up(B, bm)
    if B_pad != B:
        # Only triggers when B is not a multiple of bm; padded rows produce
        # garbage logits that are sliced off below.
        x = jnp.pad(x, ((0, B_pad - B), (0, 0)))

    grid = (B_pad // bm,)

    flat_inputs = [x]
    in_specs = [pl.BlockSpec((bm, in_dim), lambda i: (i, 0))]  # full-extent K
    for w_p, b_p in prepped:
        flat_inputs.append(w_p)
        in_specs.append(pl.BlockSpec(w_p.shape, lambda i: (0, 0)))  # resident
        flat_inputs.append(b_p)
        in_specs.append(pl.BlockSpec(b_p.shape, lambda i: (0, 0)))

    kernel = functools.partial(
        _fcnet_fused_kernel, n_layers=n_layers, use_bf16=use_bf16
    )

    out = pl.pallas_call(
        kernel,
        out_shape=jax.ShapeDtypeStruct((B_pad, out_pad), jnp.float32),
        grid_spec=pltpu.PrefetchScalarGridSpec(
            num_scalar_prefetch=0,
            grid=grid,
            in_specs=in_specs,
            out_specs=pl.BlockSpec((bm, out_pad), lambda i: (i, 0)),
        ),
        compiler_params=pltpu.CompilerParams(
            dimension_semantics=("parallel",),
        ),
    )(*flat_inputs)

    return out[:B, :out_dim]  # (B, 10) logits


def fcnet_forward_ref(x_nchw, params):
    """Pure-JAX reference for correctness checking."""
    B = x_nchw.shape[0]
    x = x_nchw.reshape(B, -1)
    n_layers = len(params)
    for li, (w_t, b) in enumerate(params):
        x = x @ w_t + b
        if li != n_layers - 1:
            x = jnp.maximum(x, 0.0)
    return x


if __name__ == "__main__":
    key = jax.random.PRNGKey(0)
    k_params, k_x = jax.random.split(key)

    in_dim, hidden_dim, n_hidden = 28 * 28, 128, 2
    params = init_fcnet_params(
        k_params, in_dim=in_dim, hidden_dim=hidden_dim, n_hidden=n_hidden, out_dim=10
    )

    # MNIST-like NCHW input (small batch).
    x = jax.random.normal(k_x, (8, 1, 28, 28), dtype=jnp.float32)

    ref = jax.block_until_ready(fcnet_forward_ref(x, params))

    # f32 operand path (tight tolerance vs reference).
    out_f32 = jax.block_until_ready(fcnet_forward_pallas(x, params, use_bf16=False))
    assert out_f32.shape == (8, 10), out_f32.shape
    assert jnp.allclose(out_f32, ref, atol=1e-4, rtol=1e-4), "f32 mismatch vs reference"

    # Default path: bf16 matmul operands (all TPU generations), f32 accumulate.
    out = jax.block_until_ready(fcnet_forward_pallas(x, params))
    assert out.shape == (8, 10), out.shape
    assert jnp.allclose(out, ref, atol=0.1, rtol=0.05), "bf16 mismatch vs reference"

    print("KERNEL_OK")
</pallas_src>

<mosaic_0001>
module attributes {stable_mosaic.version = 11 : i64} {
  func.func @_fcnet_fused_kernel(%arg0: i32, %arg1: memref<8x784xf32, #tpu.memory_space<vmem>>, %arg2: memref<784x128xf32, #tpu.memory_space<vmem>>, %arg3: memref<1x128xf32, #tpu.memory_space<vmem>>, %arg4: memref<128x128xf32, #tpu.memory_space<vmem>>, %arg5: memref<1x128xf32, #tpu.memory_space<vmem>>, %arg6: memref<128x128xf32, #tpu.memory_space<vmem>>, %arg7: memref<1x128xf32, #tpu.memory_space<vmem>>, %arg8: memref<128x128xf32, #tpu.memory_space<vmem>>, %arg9: memref<1x128xf32, #tpu.memory_space<vmem>>, %arg10: memref<8x128xf32, #tpu.memory_space<vmem>>) attributes {dimension_semantics = [#tpu.dimension_semantics<parallel>], iteration_bounds = array<i64: 1>, scalar_prefetch = 0 : i64, scratch_operands = 0 : i64, tpu.core_type = #tpu.core_type<tc>, window_params = [{transform_indices = @transform_0, window_bounds = array<i64: 8, 784>}, {pipeline_mode = #tpu.pipeline_mode<synchronous>, transform_indices = @transform_1, window_bounds = array<i64: 784, 128>}, {pipeline_mode = #tpu.pipeline_mode<synchronous>, transform_indices = @transform_2, window_bounds = array<i64: 1, 128>}, {pipeline_mode = #tpu.pipeline_mode<synchronous>, transform_indices = @transform_3, window_bounds = array<i64: 128, 128>}, {pipeline_mode = #tpu.pipeline_mode<synchronous>, transform_indices = @transform_4, window_bounds = array<i64: 1, 128>}, {pipeline_mode = #tpu.pipeline_mode<synchronous>, transform_indices = @transform_5, window_bounds = array<i64: 128, 128>}, {pipeline_mode = #tpu.pipeline_mode<synchronous>, transform_indices = @transform_6, window_bounds = array<i64: 1, 128>}, {pipeline_mode = #tpu.pipeline_mode<synchronous>, transform_indices = @transform_7, window_bounds = array<i64: 128, 128>}, {pipeline_mode = #tpu.pipeline_mode<synchronous>, transform_indices = @transform_8, window_bounds = array<i64: 1, 128>}, {transform_indices = @transform_9, window_bounds = array<i64: 8, 128>}]} {
    %c0 = arith.constant 0 : index
    %c0_0 = arith.constant 0 : index
    %0 = vector.load %arg1[%c0, %c0_0] : memref<8x784xf32, #tpu.memory_space<vmem>>, vector<8x784xf32>
    %c0_1 = arith.constant 0 : index
    %c0_2 = arith.constant 0 : index
    %1 = vector.load %arg2[%c0_1, %c0_2] : memref<784x128xf32, #tpu.memory_space<vmem>>, vector<784x128xf32>
    %c0_3 = arith.constant 0 : index
    %c0_4 = arith.constant 0 : index
    %2 = vector.load %arg3[%c0_3, %c0_4] : memref<1x128xf32, #tpu.memory_space<vmem>>, vector<1x128xf32>
    %cst = arith.constant dense<0.000000e+00> : vector<8x128xf32>
    %3 = tpu.matmul %0, %1, %cst {dimension_numbers = #tpu.dot_dimension_numbers<[1], [0], [0], [1], [0, 0, 1, 1], [], []>} : vector<8x784xf32>, vector<784x128xf32>, vector<8x128xf32> -> vector<8x128xf32>
    %4 = vector.broadcast %2 : vector<1x128xf32> to vector<8x128xf32>
    %5 = arith.addf %3, %4 : vector<8x128xf32>
    %cst_5 = arith.constant 0.000000e+00 : f32
    %6 = vector.broadcast %cst_5 : f32 to vector<8x128xf32>
    %7 = arith.maximumf %5, %6 : vector<8x128xf32>
    %c0_6 = arith.constant 0 : index
    %c0_7 = arith.constant 0 : index
    %8 = vector.load %arg4[%c0_6, %c0_7] : memref<128x128xf32, #tpu.memory_space<vmem>>, vector<128x128xf32>
    %c0_8 = arith.constant 0 : index
    %c0_9 = arith.constant 0 : index
    %9 = vector.load %arg5[%c0_8, %c0_9] : memref<1x128xf32, #tpu.memory_space<vmem>>, vector<1x128xf32>
    %cst_10 = arith.constant dense<0.000000e+00> : vector<8x128xf32>
    %10 = tpu.matmul %7, %8, %cst_10 {dimension_numbers = #tpu.dot_dimension_numbers<[1], [0], [0], [1], [0, 0, 1, 1], [], []>} : vector<8x128xf32>, vector<128x128xf32>, vector<8x128xf32> -> vector<8x128xf32>
    %11 = vector.broadcast %9 : vector<1x128xf32> to vector<8x128xf32>
    %12 = arith.addf %10, %11 : vector<8x128xf32>
    %cst_11 = arith.constant 0.000000e+00 : f32
    %13 = vector.broadcast %cst_11 : f32 to vector<8x128xf32>
    %14 = arith.maximumf %12, %13 : vector<8x128xf32>
    %c0_12 = arith.constant 0 : index
    %c0_13 = arith.constant 0 : index
    %15 = vector.load %arg6[%c0_12, %c0_13] : memref<128x128xf32, #tpu.memory_space<vmem>>, vector<128x128xf32>
    %c0_14 = arith.constant 0 : index
    %c0_15 = arith.constant 0 : index
    %16 = vector.load %arg7[%c0_14, %c0_15] : memref<1x128xf32, #tpu.memory_space<vmem>>, vector<1x128xf32>
    %cst_16 = arith.constant dense<0.000000e+00> : vector<8x128xf32>
    %17 = tpu.matmul %14, %15, %cst_16 {dimension_numbers = #tpu.dot_dimension_numbers<[1], [0], [0], [1], [0, 0, 1, 1], [], []>} : vector<8x128xf32>, vector<128x128xf32>, vector<8x128xf32> -> vector<8x128xf32>
    %18 = vector.broadcast %16 : vector<1x128xf32> to vector<8x128xf32>
    %19 = arith.addf %17, %18 : vector<8x128xf32>
    %cst_17 = arith.constant 0.000000e+00 : f32
    %20 = vector.broadcast %cst_17 : f32 to vector<8x128xf32>
    %21 = arith.maximumf %19, %20 : vector<8x128xf32>
    %c0_18 = arith.constant 0 : index
    %c0_19 = arith.constant 0 : index
    %22 = vector.load %arg8[%c0_18, %c0_19] : memref<128x128xf32, #tpu.memory_space<vmem>>, vector<128x128xf32>
    %c0_20 = arith.constant 0 : index
    %c0_21 = arith.constant 0 : index
    %23 = vector.load %arg9[%c0_20, %c0_21] : memref<1x128xf32, #tpu.memory_space<vmem>>, vector<1x128xf32>
    %cst_22 = arith.constant dense<0.000000e+00> : vector<8x128xf32>
    %24 = tpu.matmul %21, %22, %cst_22 {dimension_numbers = #tpu.dot_dimension_numbers<[1], [0], [0], [1], [0, 0, 1, 1], [], []>} : vector<8x128xf32>, vector<128x128xf32>, vector<8x128xf32> -> vector<8x128xf32>
    %25 = vector.broadcast %23 : vector<1x128xf32> to vector<8x128xf32>
    %26 = arith.addf %24, %25 : vector<8x128xf32>
    %c0_23 = arith.constant 0 : index
    %c0_24 = arith.constant 0 : index
    %27 = vector.load %arg10[%c0_23, %c0_24] : memref<8x128xf32, #tpu.memory_space<vmem>>, vector<8x128xf32>
    tpu.vector_store %arg10[%c0_23, %c0_24], %26 {strides = array<i32>} : memref<8x128xf32, #tpu.memory_space<vmem>>, vector<8x128xf32>,
    return
  }
  func.func @transform_0(%arg0: i32) -> (i32, i32) {
    %c0_i32 = arith.constant 0 : i32
    %c0_i32_0 = arith.constant 0 : i32
    return %arg0, %c0_i32 : i32, i32
  }
  func.func @transform_1(%arg0: i32) -> (i32, i32) {
    %c0_i32 = arith.constant 0 : i32
    %c0_i32_0 = arith.constant 0 : i32
    %c0_i32_1 = arith.constant 0 : i32
    return %c0_i32, %c0_i32_0 : i32, i32
  }
  func.func @transform_2(%arg0: i32) -> (i32, i32) {
    %c0_i32 = arith.constant 0 : i32
    %c0_i32_0 = arith.constant 0 : i32
    %c0_i32_1 = arith.constant 0 : i32
    return %c0_i32, %c0_i32_0 : i32, i32
  }
  func.func @transform_3(%arg0: i32) -> (i32, i32) {
    %c0_i32 = arith.constant 0 : i32
    %c0_i32_0 = arith.constant 0 : i32
    %c0_i32_1 = arith.constant 0 : i32
    return %c0_i32, %c0_i32_0 : i32, i32
  }
  func.func @transform_4(%arg0: i32) -> (i32, i32) {
    %c0_i32 = arith.constant 0 : i32
    %c0_i32_0 = arith.constant 0 : i32
    %c0_i32_1 = arith.constant 0 : i32
    return %c0_i32, %c0_i32_0 : i32, i32
  }
  func.func @transform_5(%arg0: i32) -> (i32, i32) {
    %c0_i32 = arith.constant 0 : i32
    %c0_i32_0 = arith.constant 0 : i32
    %c0_i32_1 = arith.constant 0 : i32
    return %c0_i32, %c0_i32_0 : i32, i32
  }
  func.func @transform_6(%arg0: i32) -> (i32, i32) {
    %c0_i32 = arith.constant 0 : i32
    %c0_i32_0 = arith.constant 0 : i32
    %c0_i32_1 = arith.constant 0 : i32
    return %c0_i32, %c0_i32_0 : i32, i32
  }
  func.func @transform_7(%arg0: i32) -> (i32, i32) {
    %c0_i32 = arith.constant 0 : i32
    %c0_i32_0 = arith.constant 0 : i32
    %c0_i32_1 = arith.constant 0 : i32
    return %c0_i32, %c0_i32_0 : i32, i32
  }
  func.func @transform_8(%arg0: i32) -> (i32, i32) {
    %c0_i32 = arith.constant 0 : i32
    %c0_i32_0 = arith.constant 0 : i32
    %c0_i32_1 = arith.constant 0 : i32
    return %c0_i32, %c0_i32_0 : i32, i32
  }
  func.func @transform_9(%arg0: i32) -> (i32, i32) {
    %c0_i32 = arith.constant 0 : i32
    %c0_i32_0 = arith.constant 0 : i32
    return %arg0, %c0_i32 : i32, i32
  }
}

</mosaic_0001>

<llo_original>
// kernel: tpu_custom_call.1
$region0: #{tpu_custom_call.1}
  #allocation0 [shape = 'u32[]', space=smem, size = 0x4, offset = 0x4, fixed_abs, tag = 'smem constant byte address 0x4 - core index']
  #allocation1 [shape = 'u32[144,128]{1,0:T(1,128)}', space=vmem, size = 0x12000, scoped, tag = 'internal scratch']
  %s0 = inlined_call_operand.hbm [shape: f32[8,784], index: 0, kind: input, shape index: {}]
  %s1 = inlined_call_operand.hbm [shape: f32[784,128], index: 1, kind: input, shape index: {}]
  %s2 = inlined_call_operand.vmem [shape: f32[1,128], index: 2, kind: input, shape index: {}]
  %s3 = inlined_call_operand.hbm [shape: f32[128,128], index: 3, kind: input, shape index: {}]
  %s4 = inlined_call_operand.vmem [shape: f32[1,128], index: 4, kind: input, shape index: {}]
  %s5 = inlined_call_operand.hbm [shape: f32[128,128], index: 5, kind: input, shape index: {}]
  %s6 = inlined_call_operand.vmem [shape: f32[1,128], index: 6, kind: input, shape index: {}]
  %s7 = inlined_call_operand.hbm [shape: f32[128,128], index: 7, kind: input, shape index: {}]
  %s8 = inlined_call_operand.vmem [shape: f32[1,128], index: 8, kind: input, shape index: {}]
  %s9 = inlined_call_operand.hbm [shape: f32[8,128], index: 9, kind: output, shape index: {}]
  %s10 = sld [smem:[#allocation0]]
  $region66: #{tpu_custom_call.1} parent=0
    _
  %s12 = ssub.s32 1, %s10
  %s13 = scalar_select 0, %s12, %s10
  $region1: #{tpu_custom_call.1} parent=0
    #allocation2 [shape = 'u8[28672]{0}', space=vmem, size = 0x7000, scoped, tag = 'input window, operand 0, single buffered']
    #allocation3 [shape = 's32[1]{0}', space=sflag, size = 0x4, scoped, tag = 'scoped memory for tpu_custom_call.1']
    #allocation4 [shape = 's32[1]{0}', space=sflag, size = 0x4, scoped, tag = 'scoped memory for tpu_custom_call.1']
    #allocation5 [shape = 'u8[401408]{0}', space=vmem, size = 0x62000, scoped, tag = 'input window, operand 1, single buffered']
    #allocation6 [shape = 's32[1]{0}', space=sflag, size = 0x4, scoped, tag = 'scoped memory for tpu_custom_call.1']
    #allocation7 [shape = 'u8[65536]{0}', space=vmem, size = 0x10000, scoped, tag = 'input window, operand 3, single buffered']
    #allocation8 [shape = 'u8[65536]{0}', space=vmem, size = 0x10000, scoped, tag = 'input window, operand 5, single buffered']
    #allocation9 [shape = 's32[1]{0}', space=sflag, size = 0x4, scoped, tag = 'scoped memory for tpu_custom_call.1']
    #allocation10 [shape = 'u8[65536]{0}', space=vmem, size = 0x10000, scoped, tag = 'input window, operand 7, single buffered']
    #allocation11 [shape = 'u8[4096]{0}', space=vmem, size = 0x1000, scoped, tag = 'output window, operand 0, single buffered']
    %14 = vsyncpa [#allocation3], 0
    %15 = vsyncpa [#allocation6], 0
    %16 = vsyncpa [#allocation9], 0
    %17 = vsyncpa [#allocation4], 0
    // Predicated region
    $region2: #{tpu_custom_call.1} parent=1 // pred_check
      _
    $region3: #{tpu_custom_call.1} parent=1 // pred_check_branch
      %19 = sbr.rel (0) target = $region5
    $region4: #{tpu_custom_call.1} parent=1 // pred_region
      %s21 = ssub.s32 896, 896
      %22 = vsyncadd [#allocation3], %s21
      %s24 = sshll.u32 [#allocation2], 4
      %s25 = int_to_ptr.vmem [resolvable:$true] %s24
      %27 = dma.hbm_to_vmem [thread:$0]  %s0, 896, %s25, [#allocation3]
    $region5: #{tpu_custom_call.1} parent=1 // pred_fallthru
      _
    // Predicated region
    $region6: #{tpu_custom_call.1} parent=1 // pred_check
      _
    $region7: #{tpu_custom_call.1} parent=1 // pred_check_branch
      %29 = sbr.rel (0) target = $region9
    $region8: #{tpu_custom_call.1} parent=1 // pred_region
      %s31 = ssub.s32 12544, 12544
      %32 = vsyncadd [#allocation6], %s31
      %s33 = sshll.u32 [#allocation5], 4
      %s34 = int_to_ptr.vmem [resolvable:$true] %s33
      %39 = dma.hbm_to_vmem [thread:$0]  %s1, 12544, %s34, [#allocation6], 128, 128, 8
    $region9: #{tpu_custom_call.1} parent=1 // pred_fallthru
      _
    // Predicated region
    $region10: #{tpu_custom_call.1} parent=1 // pred_check
      _
    $region11: #{tpu_custom_call.1} parent=1 // pred_check_branch
      %41 = sbr.rel (0) target = $region13
    $region12: #{tpu_custom_call.1} parent=1 // pred_region
      _
    $region13: #{tpu_custom_call.1} parent=1 // pred_fallthru
      _
    // Predicated region
    $region14: #{tpu_custom_call.1} parent=1 // pred_check
      _
    $region15: #{tpu_custom_call.1} parent=1 // pred_check_branch
      %43 = sbr.rel (0) target = $region17
    $region16: #{tpu_custom_call.1} parent=1 // pred_region
      %s45 = ssub.s32 2048, 2048
      %46 = vsyncadd [#allocation6], %s45
      %s47 = sshll.u32 [#allocation7], 4
      %s48 = int_to_ptr.vmem [resolvable:$true] %s47
      %53 = dma.hbm_to_vmem [thread:$0]  %s3, 2048, %s48, [#allocation6], 128, 128, 8
    $region17: #{tpu_custom_call.1} parent=1 // pred_fallthru
      _
    // Predicated region
    $region18: #{tpu_custom_call.1} parent=1 // pred_check
      _
    $region19: #{tpu_custom_call.1} parent=1 // pred_check_branch
      %55 = sbr.rel (0) target = $region21
    $region20: #{tpu_custom_call.1} parent=1 // pred_region
      _
    $region21: #{tpu_custom_call.1} parent=1 // pred_fallthru
      _
    // Predicated region
    $region22: #{tpu_custom_call.1} parent=1 // pred_check
      _
    $region23: #{tpu_custom_call.1} parent=1 // pred_check_branch
      %57 = sbr.rel (0) target = $region25
    $region24: #{tpu_custom_call.1} parent=1 // pred_region
      %s59 = ssub.s32 2048, 2048
      %60 = vsyncadd [#allocation9], %s59
      %s61 = sshll.u32 [#allocation8], 4
      %s62 = int_to_ptr.vmem [resolvable:$true] %s61
      %67 = dma.hbm_to_vmem [thread:$0]  %s5, 2048, %s62, [#allocation9], 128, 128, 8
    $region25: #{tpu_custom_call.1} parent=1 // pred_fallthru
      _
    // Predicated region
    $region26: #{tpu_custom_call.1} parent=1 // pred_check
      _
    $region27: #{tpu_custom_call.1} parent=1 // pred_check_branch
      %69 = sbr.rel (0) target = $region29
    $region28: #{tpu_custom_call.1} parent=1 // pred_region
      _
    $region29: #{tpu_custom_call.1} parent=1 // pred_fallthru
      _
    // Predicated region
    $region30: #{tpu_custom_call.1} parent=1 // pred_check
      _
    $region31: #{tpu_custom_call.1} parent=1 // pred_check_branch
      %71 = sbr.rel (0) target = $region33
    $region32: #{tpu_custom_call.1} parent=1 // pred_region
      %s73 = ssub.s32 2048, 2048
      %74 = vsyncadd [#allocation9], %s73
      %s75 = sshll.u32 [#allocation10], 4
      %s76 = int_to_ptr.vmem [resolvable:$true] %s75
      %81 = dma.hbm_to_vmem [thread:$0]  %s7, 2048, %s76, [#allocation9], 128, 128, 8
    $region33: #{tpu_custom_call.1} parent=1 // pred_fallthru
      _
    // Predicated region
    $region34: #{tpu_custom_call.1} parent=1 // pred_check
      _
    $region35: #{tpu_custom_call.1} parent=1 // pred_check_branch
      %83 = sbr.rel (0) target = $region37
    $region36: #{tpu_custom_call.1} parent=1 // pred_region
      _
    $region37: #{tpu_custom_call.1} parent=1 // pred_fallthru
      _
    // Predicated region
    $region38: #{tpu_custom_call.1} parent=1 // pred_check
      _
    $region39: #{tpu_custom_call.1} parent=1 // pred_check_branch
      %85 = sbr.rel (0) target = $region41
    $region40: #{tpu_custom_call.1} parent=1 // pred_region
      %86 = dma.done [#allocation3], 896
    $region41: #{tpu_custom_call.1} parent=1 // pred_fallthru
      _
    // Predicated region
    $region42: #{tpu_custom_call.1} parent=1 // pred_check
      _
    $region43: #{tpu_custom_call.1} parent=1 // pred_check_branch
      %88 = sbr.rel (0) target = $region45
    $region44: #{tpu_custom_call.1} parent=1 // pred_region
      %89 = dma.done [#allocation6], 12544
    $region45: #{tpu_custom_call.1} parent=1 // pred_fallthru
      _
    // Predicated region
    $region46: #{tpu_custom_call.1} parent=1 // pred_check
      _
    $region47: #{tpu_custom_call.1} parent=1 // pred_check_branch
      %91 = sbr.rel (0) target = $region49
    $region48: #{tpu_custom_call.1} parent=1 // pred_region
      %92 = dma.done [#allocation6], 2048
    $region49: #{tpu_custom_call.1} parent=1 // pred_fallthru
      _
    // Predicated region
    $region50: #{tpu_custom_call.1} parent=1 // pred_check
      _
    $region51: #{tpu_custom_call.1} parent=1 // pred_check_branch
      %94 = sbr.rel (0) target = $region53
    $region52: #{tpu_custom_call.1} parent=1 // pred_region
      %95 = dma.done [#allocation9], 2048
    $region53: #{tpu_custom_call.1} parent=1 // pred_fallthru
      _
    // Predicated region
    $region54: #{tpu_custom_call.1} parent=1 // pred_check
      _
    $region55: #{tpu_custom_call.1} parent=1 // pred_check_branch
      %97 = sbr.rel (0) target = $region57
    $region56: #{tpu_custom_call.1} parent=1 // pred_region
      %98 = dma.done [#allocation9], 2048
    $region57: #{tpu_custom_call.1} parent=1 // pred_fallthru
      _
    %v99 = vld [vmem:[#allocation2] sm:$0xff]
    %v100 = vld [vmem:[#allocation2 + $0x8] sm:$0xff]
    %v101 = vld [vmem:[#allocation2 + $0x10] sm:$0xff]
    %v102 = vld [vmem:[#allocation2 + $0x18] sm:$0xff]
    %v103 = vld [vmem:[#allocation2 + $0x20] sm:$0xff]
    %v104 = vld [vmem:[#allocation2 + $0x28] sm:$0xff]
    %v105 = vld [vmem:[#allocation2 + $0x30] sm:$0xff]
    %v106 = vld [vmem:[#allocation5] sm:$0xff]
    %v107 = vld [vmem:[#allocation5 + $0x8] sm:$0xff]
    %v108 = vld [vmem:[#allocation5 + $0x10] sm:$0xff]
    %v109 = vld [vmem:[#allocation5 + $0x18] sm:$0xff]
    %v110 = vld [vmem:[#allocation5 + $0x20] sm:$0xff]
    %v111 = vld [vmem:[#allocation5 + $0x28] sm:$0xff]
    %v112 = vld [vmem:[#allocation5 + $0x30] sm:$0xff]
    %v113 = vld [vmem:[#allocation5 + $0x38] sm:$0xff]
    %v114 = vld [vmem:[#allocation5 + $0x40] sm:$0xff]
    %v115 = vld [vmem:[#allocation5 + $0x48] sm:$0xff]
    %v116 = vld [vmem:[#allocation5 + $0x50] sm:$0xff]
    %v117 = vld [vmem:[#allocation5 + $0x58] sm:$0xff]
    %v118 = vld [vmem:[#allocation5 + $0x60] sm:$0xff]
    %v119 = vld [vmem:[#allocation5 + $0x68] sm:$0xff]
    %v120 = vld [vmem:[#allocation5 + $0x70] sm:$0xff]
    %v121 = vld [vmem:[#allocation5 + $0x78] sm:$0xff]
    %v122 = vld [vmem:[#allocation5 + $0x80] sm:$0xff]
    %v123 = vld [vmem:[#allocation5 + $0x88] sm:$0xff]
    %v124 = vld [vmem:[#allocation5 + $0x90] sm:$0xff]
    %v125 = vld [vmem:[#allocation5 + $0x98] sm:$0xff]
    %v126 = vld [vmem:[#allocation5 + $0xa0] sm:$0xff]
    %v127 = vld [vmem:[#allocation5 + $0xa8] sm:$0xff]
    %v128 = vld [vmem:[#allocation5 + $0xb0] sm:$0xff]
    %v129 = vld [vmem:[#allocation5 + $0xb8] sm:$0xff]
    %v130 = vld [vmem:[#allocation5 + $0xc0] sm:$0xff]
    %v131 = vld [vmem:[#allocation5 + $0xc8] sm:$0xff]
    %v132 = vld [vmem:[#allocation5 + $0xd0] sm:$0xff]
    %v133 = vld [vmem:[#allocation5 + $0xd8] sm:$0xff]
    %v134 = vld [vmem:[#allocation5 + $0xe0] sm:$0xff]
    %v135 = vld [vmem:[#allocation5 + $0xe8] sm:$0xff]
    %v136 = vld [vmem:[#allocation5 + $0xf0] sm:$0xff]
    %v137 = vld [vmem:[#allocation5 + $0xf8] sm:$0xff]
    %v138 = vld [vmem:[#allocation5 + $0x100] sm:$0xff]
    %v139 = vld [vmem:[#allocation5 + $0x108] sm:$0xff]
    %v140 = vld [vmem:[#allocation5 + $0x110] sm:$0xff]
    %v141 = vld [vmem:[#allocation5 + $0x118] sm:$0xff]
    %v142 = vld [vmem:[#allocation5 + $0x120] sm:$0xff]
    %v143 = vld [vmem:[#allocation5 + $0x128] sm:$0xff]
    %v144 = vld [vmem:[#allocation5 + $0x130] sm:$0xff]
    %v145 = vld [vmem:[#allocation5 + $0x138] sm:$0xff]
    %v146 = vld [vmem:[#allocation5 + $0x140] sm:$0xff]
    %v147 = vld [vmem:[#allocation5 + $0x148] sm:$0xff]
    %v148 = vld [vmem:[#allocation5 + $0x150] sm:$0xff]
    %v149 = vld [vmem:[#allocation5 + $0x158] sm:$0xff]
    %v150 = vld [vmem:[#allocation5 + $0x160] sm:$0xff]
    %v151 = vld [vmem:[#allocation5 + $0x168] sm:$0xff]
    %v152 = vld [vmem:[#allocation5 + $0x170] sm:$0xff]
    %v153 = vld [vmem:[#allocation5 + $0x178] sm:$0xff]
    %v154 = vld [vmem:[#allocation5 + $0x180] sm:$0xff]
    %v155 = vld [vmem:[#allocation5 + $0x188] sm:$0xff]
    %v156 = vld [vmem:[#allocation5 + $0x190] sm:$0xff]
    %v157 = vld [vmem:[#allocation5 + $0x198] sm:$0xff]
    %v158 = vld [vmem:[#allocation5 + $0x1a0] sm:$0xff]
    %v159 = vld [vmem:[#allocation5 + $0x1a8] sm:$0xff]
    %v160 = vld [vmem:[#allocation5 + $0x1b0] sm:$0xff]
    %v161 = vld [vmem:[#allocation5 + $0x1b8] sm:$0xff]
    %v162 = vld [vmem:[#allocation5 + $0x1c0] sm:$0xff]
    %v163 = vld [vmem:[#allocation5 + $0x1c8] sm:$0xff]
    %v164 = vld [vmem:[#allocation5 + $0x1d0] sm:$0xff]
    %v165 = vld [vmem:[#allocation5 + $0x1d8] sm:$0xff]
    %v166 = vld [vmem:[#allocation5 + $0x1e0] sm:$0xff]
    %v167 = vld [vmem:[#allocation5 + $0x1e8] sm:$0xff]
    %v168 = vld [vmem:[#allocation5 + $0x1f0] sm:$0xff]
    %v169 = vld [vmem:[#allocation5 + $0x1f8] sm:$0xff]
    %v170 = vld [vmem:[#allocation5 + $0x200] sm:$0xff]
    %v171 = vld [vmem:[#allocation5 + $0x208] sm:$0xff]
    %v172 = vld [vmem:[#allocation5 + $0x210] sm:$0xff]
    %v173 = vld [vmem:[#allocation5 + $0x218] sm:$0xff]
    %v174 = vld [vmem:[#allocation5 + $0x220] sm:$0xff]
    %v175 = vld [vmem:[#allocation5 + $0x228] sm:$0xff]
    %v176 = vld [vmem:[#allocation5 + $0x230] sm:$0xff]
    %v177 = vld [vmem:[#allocation5 + $0x238] sm:$0xff]
    %v178 = vld [vmem:[#allocation5 + $0x240] sm:$0xff]
    %v179 = vld [vmem:[#allocation5 + $0x248] sm:$0xff]
    %v180 = vld [vmem:[#allocation5 + $0x250] sm:$0xff]
    %v181 = vld [vmem:[#allocation5 + $0x258] sm:$0xff]
    %v182 = vld [vmem:[#allocation5 + $0x260] sm:$0xff]
    %v183 = vld [vmem:[#allocation5 + $0x268] sm:$0xff]
    %v184 = vld [vmem:[#allocation5 + $0x270] sm:$0xff]
    %v185 = vld [vmem:[#allocation5 + $0x278] sm:$0xff]
    %v186 = vld [vmem:[#allocation5 + $0x280] sm:$0xff]
    %v187 = vld [vmem:[#allocation5 + $0x288] sm:$0xff]
    %v188 = vld [vmem:[#allocation5 + $0x290] sm:$0xff]
    %v189 = vld [vmem:[#allocation5 + $0x298] sm:$0xff]
    %v190 = vld [vmem:[#allocation5 + $0x2a0] sm:$0xff]
    %v191 = vld [vmem:[#allocation5 + $0x2a8] sm:$0xff]
    %v192 = vld [vmem:[#allocation5 + $0x2b0] sm:$0xff]
    %v193 = vld [vmem:[#allocation5 + $0x2b8] sm:$0xff]
    %v194 = vld [vmem:[#allocation5 + $0x2c0] sm:$0xff]
    %v195 = vld [vmem:[#allocation5 + $0x2c8] sm:$0xff]
    %v196 = vld [vmem:[#allocation5 + $0x2d0] sm:$0xff]
    %v197 = vld [vmem:[#allocation5 + $0x2d8] sm:$0xff]
    %v198 = vld [vmem:[#allocation5 + $0x2e0] sm:$0xff]
    %v199 = vld [vmem:[#allocation5 + $0x2e8] sm:$0xff]
    %v200 = vld [vmem:[#allocation5 + $0x2f0] sm:$0xff]
    %v201 = vld [vmem:[#allocation5 + $0x2f8] sm:$0xff]
    %v202 = vld [vmem:[#allocation5 + $0x300] sm:$0xff]
    %v203 = vld [vmem:[#allocation5 + $0x308] sm:$0xff]
    %v204 = vld [vmem:[%s2] sm:$0x1]
    %v206 = vlaneseq
    %v207 = vshrl.u32 %v206, 7
    %v208 = vsub.s32 0, %v207
    %v209 = vrot.slane %v204, %v208
    %vm211 = vcmask 130048
    %v213 = vsel %vm211, %v105, 0
    %215 = vmatprep.subr.mxu0 0.0
    %216 = vmatpush1.msra.mxu0 %v106
    %217 = vmatprep.subr.mxu0 0.0
    %218 = vmatpush1.msra.mxu0 %v107
    %219 = vmatprep.subr.mxu0 0.0
    %220 = vmatpush1.msra.mxu0 %v108
    %221 = vmatprep.subr.mxu0 0.0
    %222 = vmatpush1.msra.mxu0 %v109
    %223 = vmatprep.subr.mxu0 0.0
    %224 = vmatpush1.msra.mxu0 %v110
    %225 = vmatprep.subr.mxu0 0.0
    %226 = vmatpush1.msra.mxu0 %v111
    %227 = vmatprep.subr.mxu0 0.0
    %228 = vmatpush1.msra.mxu0 %v112
    %229 = vmatprep.subr.mxu0 0.0
    %230 = vmatpush1.msra.mxu0 %v113
    %231 = vmatprep.subr.mxu0 0.0
    %232 = vmatpush1.msra.mxu0 %v114
    %233 = vmatprep.subr.mxu0 0.0
    %234 = vmatpush1.msra.mxu0 %v115
    %235 = vmatprep.subr.mxu0 0.0
    %236 = vmatpush1.msra.mxu0 %v116
    %237 = vmatprep.subr.mxu0 0.0
    %238 = vmatpush1.msra.mxu0 %v117
    %239 = vmatprep.subr.mxu0 0.0
    %240 = vmatpush1.msra.mxu0 %v118
    %241 = vmatprep.subr.mxu0 0.0
    %242 = vmatpush1.msra.mxu0 %v119
    %243 = vmatprep.subr.mxu0 0.0
    %244 = vmatpush1.msra.mxu0 %v120
    %245 = vmatprep.subr.mxu0 0.0
    %246 = vmatpush1.msra.mxu0 %v121
    %247 = vmatprep.subr.mxu0 0.0
    %248 = vmatpush1.msra.mxu0 %v122
    %249 = vmatprep.subr.mxu0 0.0
    %250 = vmatpush1.msra.mxu0 %v123
    %251 = vmatprep.subr.mxu0 0.0
    %252 = vmatpush1.msra.mxu0 %v124
    %253 = vmatprep.subr.mxu0 0.0
    %254 = vmatpush1.msra.mxu0 %v125
    %255 = vmatprep.subr.mxu0 0.0
    %256 = vmatpush1.msra.mxu0 %v126
    %257 = vmatprep.subr.mxu0 0.0
    %258 = vmatpush1.msra.mxu0 %v127
    %259 = vmatprep.subr.mxu0 0.0
    %260 = vmatpush1.msra.mxu0 %v128
    %261 = vmatprep.subr.mxu0 0.0
    %262 = vmatpush1.msra.mxu0 %v129
    %263 = vmatprep.subr.mxu0 0.0
    %264 = vmatpush1.msra.mxu0 %v130
    %265 = vmatprep.subr.mxu0 0.0
    %266 = vmatpush1.msra.mxu0 %v131
    %267 = vmatprep.subr.mxu0 0.0
    %268 = vmatpush1.msra.mxu0 %v132
    %269 = vmatprep.subr.mxu0 0.0
    %270 = vmatpush1.msra.mxu0 %v133
    %271 = vmatprep.subr.mxu0 0.0
    %272 = vmatpush1.msra.mxu0 %v134
    %273 = vmatprep.subr.mxu0 0.0
    %274 = vmatpush1.msra.mxu0 %v135
    %275 = vmatprep.subr.mxu0 0.0
    %276 = vmatpush1.msra.mxu0 %v136
    %277 = vmatprep.subr.mxu0 0.0
    %278 = vmatpush1.msra.mxu0 %v137
    %279 = vmatprep.mubr.f32.mxu0 %v100
    %280 = vmatmul.mubr.f32.gmra.mrb[0].mxu0 %v99
    %v281 = vpop.f32.mrb[0].mxu0
    %v282 = vadd.f32 %v209, %v281
    %v283 = vpop.f32.mrb[0].mxu0
    %284 = vdwg.mxu0
    %285 = vmatprep.subr.mxu0 0.0
    %286 = vmatpush1.msra.mxu0 %v138
    %287 = vmatprep.subr.mxu0 0.0
    %288 = vmatpush1.msra.mxu0 %v139
    %289 = vmatprep.subr.mxu0 0.0
    %290 = vmatpush1.msra.mxu0 %v140
    %291 = vmatprep.subr.mxu0 0.0
    %292 = vmatpush1.msra.mxu0 %v141
    %293 = vmatprep.subr.mxu0 0.0
    %294 = vmatpush1.msra.mxu0 %v142
    %295 = vmatprep.subr.mxu0 0.0
    %296 = vmatpush1.msra.mxu0 %v143
    %297 = vmatprep.subr.mxu0 0.0
    %298 = vmatpush1.msra.mxu0 %v144
    %299 = vmatprep.subr.mxu0 0.0
    %300 = vmatpush1.msra.mxu0 %v145
    %301 = vmatprep.subr.mxu0 0.0
    %302 = vmatpush1.msra.mxu0 %v146
    %303 = vmatprep.subr.mxu0 0.0
    %304 = vmatpush1.msra.mxu0 %v147
    %305 = vmatprep.subr.mxu0 0.0
    %306 = vmatpush1.msra.mxu0 %v148
    %307 = vmatprep.subr.mxu0 0.0
    %308 = vmatpush1.msra.mxu0 %v149
    %309 = vmatprep.subr.mxu0 0.0
    %310 = vmatpush1.msra.mxu0 %v150
    %311 = vmatprep.subr.mxu0 0.0
    %312 = vmatpush1.msra.mxu0 %v151
    %313 = vmatprep.subr.mxu0 0.0
    %314 = vmatpush1.msra.mxu0 %v152
    %315 = vmatprep.subr.mxu0 0.0
    %316 = vmatpush1.msra.mxu0 %v153
    %317 = vmatprep.subr.mxu0 0.0
    %318 = vmatpush1.msra.mxu0 %v154
    %319 = vmatprep.subr.mxu0 0.0
    %320 = vmatpush1.msra.mxu0 %v155
    %321 = vmatprep.subr.mxu0 0.0
    %322 = vmatpush1.msra.mxu0 %v156
    %323 = vmatprep.subr.mxu0 0.0
    %324 = vmatpush1.msra.mxu0 %v157
    %325 = vmatprep.subr.mxu0 0.0
    %326 = vmatpush1.msra.mxu0 %v158
    %327 = vmatprep.subr.mxu0 0.0
    %328 = vmatpush1.msra.mxu0 %v159
    %329 = vmatprep.subr.mxu0 0.0
    %330 = vmatpush1.msra.mxu0 %v160
    %331 = vmatprep.subr.mxu0 0.0
    %332 = vmatpush1.msra.mxu0 %v161
    %333 = vmatprep.subr.mxu0 0.0
    %334 = vmatpush1.msra.mxu0 %v162
    %335 = vmatprep.subr.mxu0 0.0
    %336 = vmatpush1.msra.mxu0 %v163
    %337 = vmatprep.subr.mxu0 0.0
    %338 = vmatpush1.msra.mxu0 %v164
    %339 = vmatprep.subr.mxu0 0.0
    %340 = vmatpush1.msra.mxu0 %v165
    %341 = vmatprep.subr.mxu0 0.0
    %342 = vmatpush1.msra.mxu0 %v166
    %343 = vmatprep.subr.mxu0 0.0
    %344 = vmatpush1.msra.mxu0 %v167
    %345 = vmatprep.subr.mxu0 0.0
    %346 = vmatpush1.msra.mxu0 %v168
    %347 = vmatprep.subr.mxu0 0.0
    %348 = vmatpush1.msra.mxu0 %v169
    %349 = vmatprep.mubr.f32.mxu0 %v102
    %350 = vmatmul.mubr.f32.gmra.mrb[0].mxu0 %v101
    %v351 = vpop.f32.mrb[0].mxu0
    %v352 = vadd.f32 %v282, %v351
    %v353 = vpop.f32.mrb[0].mxu0
    %354 = vdwg.mxu0
    %355 = vmatprep.subr.mxu0 0.0
    %356 = vmatpush1.msra.mxu0 %v170
    %357 = vmatprep.subr.mxu0 0.0
    %358 = vmatpush1.msra.mxu0 %v171
    %359 = vmatprep.subr.mxu0 0.0
    %360 = vmatpush1.msra.mxu0 %v172
    %361 = vmatprep.subr.mxu0 0.0
    %362 = vmatpush1.msra.mxu0 %v173
    %363 = vmatprep.subr.mxu0 0.0
    %364 = vmatpush1.msra.mxu0 %v174
    %365 = vmatprep.subr.mxu0 0.0
    %366 = vmatpush1.msra.mxu0 %v175
    %367 = vmatprep.subr.mxu0 0.0
    %368 = vmatpush1.msra.mxu0 %v176
    %369 = vmatprep.subr.mxu0 0.0
    %370 = vmatpush1.msra.mxu0 %v177
    %371 = vmatprep.subr.mxu0 0.0
    %372 = vmatpush1.msra.mxu0 %v178
    %373 = vmatprep.subr.mxu0 0.0
    %374 = vmatpush1.msra.mxu0 %v179
    %375 = vmatprep.subr.mxu0 0.0
    %376 = vmatpush1.msra.mxu0 %v180
    %377 = vmatprep.subr.mxu0 0.0
    %378 = vmatpush1.msra.mxu0 %v181
    %379 = vmatprep.subr.mxu0 0.0
    %380 = vmatpush1.msra.mxu0 %v182
    %381 = vmatprep.subr.mxu0 0.0
    %382 = vmatpush1.msra.mxu0 %v183
    %383 = vmatprep.subr.mxu0 0.0
    %384 = vmatpush1.msra.mxu0 %v184
    %385 = vmatprep.subr.mxu0 0.0
    %386 = vmatpush1.msra.mxu0 %v185
    %387 = vmatprep.subr.mxu0 0.0
    %388 = vmatpush1.msra.mxu0 %v186
    %389 = vmatprep.subr.mxu0 0.0
    %390 = vmatpush1.msra.mxu0 %v187
    %391 = vmatprep.subr.mxu0 0.0
    %392 = vmatpush1.msra.mxu0 %v188
    %393 = vmatprep.subr.mxu0 0.0
    %394 = vmatpush1.msra.mxu0 %v189
    %395 = vmatprep.subr.mxu0 0.0
    %396 = vmatpush1.msra.mxu0 %v190
    %397 = vmatprep.subr.mxu0 0.0
    %398 = vmatpush1.msra.mxu0 %v191
    %399 = vmatprep.subr.mxu0 0.0
    %400 = vmatpush1.msra.mxu0 %v192
    %401 = vmatprep.subr.mxu0 0.0
    %402 = vmatpush1.msra.mxu0 %v193
    %403 = vmatprep.subr.mxu0 0.0
    %404 = vmatpush1.msra.mxu0 %v194
    %405 = vmatprep.subr.mxu0 0.0
    %406 = vmatpush1.msra.mxu0 %v195
    %407 = vmatprep.subr.mxu0 0.0
    %408 = vmatpush1.msra.mxu0 %v196
    %409 = vmatprep.subr.mxu0 0.0
    %410 = vmatpush1.msra.mxu0 %v197
    %411 = vmatprep.subr.mxu0 0.0
    %412 = vmatpush1.msra.mxu0 %v198
    %413 = vmatprep.subr.mxu0 0.0
    %414 = vmatpush1.msra.mxu0 %v199
    %415 = vmatprep.subr.mxu0 0.0
    %416 = vmatpush1.msra.mxu0 %v200
    %417 = vmatprep.subr.mxu0 0.0
    %418 = vmatpush1.msra.mxu0 %v201
    %419 = vmatprep.mubr.f32.mxu0 %v104
    %420 = vmatmul.mubr.f32.gmra.mrb[0].mxu0 %v103
    %v421 = vpop.f32.mrb[0].mxu0
    %v422 = vadd.f32 %v352, %v421
    %v423 = vpop.f32.mrb[0].mxu0
    %424 = vdwg.mxu0
    %425 = vmatprep.subr.mxu0 0.0
    %426 = vmatpush1.msra.mxu0 %v202
    %427 = vmatprep.subr.mxu0 0.0
    %428 = vmatpush1.msra.mxu0 %v203
    %429 = vmatprep.subr.mxu0 0.0
    %430 = vmatpush1.msra.mxu0 0.0
    %431 = vmatprep.subr.mxu0 0.0
    %432 = vmatpush1.msra.mxu0 0.0
    %433 = vmatprep.subr.mxu0 0.0
    %434 = vmatpush1.msra.mxu0 0.0
    %435 = vmatprep.subr.mxu0 0.0
    %436 = vmatpush1.msra.mxu0 0.0
    %437 = vmatprep.subr.mxu0 0.0
    %438 = vmatpush1.msra.mxu0 0.0
    %439 = vmatprep.subr.mxu0 0.0
    %440 = vmatpush1.msra.mxu0 0.0
    %441 = vmatprep.subr.mxu0 0.0
    %442 = vmatpush1.msra.mxu0 0.0
    %443 = vmatprep.subr.mxu0 0.0
    %444 = vmatpush1.msra.mxu0 0.0
    %445 = vmatprep.subr.mxu0 0.0
    %446 = vmatpush1.msra.mxu0 0.0
    %447 = vmatprep.subr.mxu0 0.0
    %448 = vmatpush1.msra.mxu0 0.0
    %449 = vmatprep.subr.mxu0 0.0
    %450 = vmatpush1.msra.mxu0 0.0
    %451 = vmatprep.subr.mxu0 0.0
    %452 = vmatpush1.msra.mxu0 0.0
    %453 = vmatprep.subr.mxu0 0.0
    %454 = vmatpush1.msra.mxu0 0.0
    %455 = vmatprep.subr.mxu0 0.0
    %456 = vmatpush1.msra.mxu0 0.0
    %457 = vmatprep.subr.mxu0 0.0
    %458 = vmatpush1.msra.mxu0 0.0
    %459 = vmatprep.subr.mxu0 0.0
    %460 = vmatpush1.msra.mxu0 0.0
    %461 = vmatprep.subr.mxu0 0.0
    %462 = vmatpush1.msra.mxu0 0.0
    %463 = vmatprep.subr.mxu0 0.0
    %464 = vmatpush1.msra.mxu0 0.0
    %465 = vmatprep.subr.mxu0 0.0
    %466 = vmatpush1.msra.mxu0 0.0
    %467 = vmatprep.subr.mxu0 0.0
    %468 = vmatpush1.msra.mxu0 0.0
    %469 = vmatprep.subr.mxu0 0.0
    %470 = vmatpush1.msra.mxu0 0.0
    %471 = vmatprep.subr.mxu0 0.0
    %472 = vmatpush1.msra.mxu0 0.0
    %473 = vmatprep.subr.mxu0 0.0
    %474 = vmatpush1.msra.mxu0 0.0
    %475 = vmatprep.subr.mxu0 0.0
    %476 = vmatpush1.msra.mxu0 0.0
    %477 = vmatprep.subr.mxu0 0.0
    %478 = vmatpush1.msra.mxu0 0.0
    %479 = vmatprep.subr.mxu0 0.0
    %480 = vmatpush1.msra.mxu0 0.0
    %481 = vmatprep.subr.mxu0 0.0
    %482 = vmatpush1.msra.mxu0 0.0
    %483 = vmatprep.subr.mxu0 0.0
    %484 = vmatpush1.msra.mxu0 0.0
    %485 = vmatprep.subr.mxu0 0.0
    %486 = vmatpush1.msra.mxu0 0.0
    %487 = vmatprep.subr.mxu0 0.0
    %488 = vmatpush1.msra.mxu0 0.0
    %489 = vmatprep.mubr.f32.mxu0 0.0
    %490 = vmatmul.mubr.f32.gmra.mrb[0].mxu0 %v213
    %v491 = vpop.f32.mrb[0].mxu0
    %v492 = vadd.f32 %v422, %v491
    %v493 = vpop.f32.mrb[0].mxu0
    %494 = vdwg.mxu0
    %v495 = vmax.f32 %v492, 0.0
    %v496 = vld [vmem:[#allocation7] sm:$0xff]
    %v497 = vld [vmem:[#allocation7 + $0x8] sm:$0xff]
    %v498 = vld [vmem:[#allocation7 + $0x10] sm:$0xff]
    %v499 = vld [vmem:[#allocation7 + $0x18] sm:$0xff]
    %v500 = vld [vmem:[#allocation7 + $0x20] sm:$0xff]
    %v501 = vld [vmem:[#allocation7 + $0x28] sm:$0xff]
    %v502 = vld [vmem:[#allocation7 + $0x30] sm:$0xff]
    %v503 = vld [vmem:[#allocation7 + $0x38] sm:$0xff]
    %v504 = vld [vmem:[#allocation7 + $0x40] sm:$0xff]
    %v505 = vld [vmem:[#allocation7 + $0x48] sm:$0xff]
    %v506 = vld [vmem:[#allocation7 + $0x50] sm:$0xff]
    %v507 = vld [vmem:[#allocation7 + $0x58] sm:$0xff]
    %v508 = vld [vmem:[#allocation7 + $0x60] sm:$0xff]
    %v509 = vld [vmem:[#allocation7 + $0x68] sm:$0xff]
    %v510 = vld [vmem:[#allocation7 + $0x70] sm:$0xff]
    %v511 = vld [vmem:[#allocation7 + $0x78] sm:$0xff]
    %v512 = vld [vmem:[%s4] sm:$0x1]
    %v514 = vlaneseq
    %v515 = vshrl.u32 %v514, 7
    %v516 = vsub.s32 0, %v515
    %v517 = vrot.slane %v512, %v516
    %519 = vmatprep.subr.mxu0 0.0
    %520 = vmatpush1.msra.mxu0 %v496
    %521 = vmatprep.subr.mxu0 0.0
    %522 = vmatpush1.msra.mxu0 %v497
    %523 = vmatprep.subr.mxu0 0.0
    %524 = vmatpush1.msra.mxu0 %v498
    %525 = vmatprep.subr.mxu0 0.0
    %526 = vmatpush1.msra.mxu0 %v499
    %527 = vmatprep.subr.mxu0 0.0
    %528 = vmatpush1.msra.mxu0 %v500
    %529 = vmatprep.subr.mxu0 0.0
    %530 = vmatpush1.msra.mxu0 %v501
    %531 = vmatprep.subr.mxu0 0.0
    %532 = vmatpush1.msra.mxu0 %v502
    %533 = vmatprep.subr.mxu0 0.0
    %534 = vmatpush1.msra.mxu0 %v503
    %535 = vmatprep.subr.mxu0 0.0
    %536 = vmatpush1.msra.mxu0 %v504
    %537 = vmatprep.subr.mxu0 0.0
    %538 = vmatpush1.msra.mxu0 %v505
    %539 = vmatprep.subr.mxu0 0.0
    %540 = vmatpush1.msra.mxu0 %v506
    %541 = vmatprep.subr.mxu0 0.0
    %542 = vmatpush1.msra.mxu0 %v507
    %543 = vmatprep.subr.mxu0 0.0
    %544 = vmatpush1.msra.mxu0 %v508
    %545 = vmatprep.subr.mxu0 0.0
    %546 = vmatpush1.msra.mxu0 %v509
    %547 = vmatprep.subr.mxu0 0.0
    %548 = vmatpush1.msra.mxu0 %v510
    %549 = vmatprep.subr.mxu0 0.0
    %550 = vmatpush1.msra.mxu0 %v511
    %551 = vmatprep.subr.mxu0 0.0
    %552 = vmatpush1.msra.mxu0 0.0
    %553 = vmatprep.subr.mxu0 0.0
    %554 = vmatpush1.msra.mxu0 0.0
    %555 = vmatprep.subr.mxu0 0.0
    %556 = vmatpush1.msra.mxu0 0.0
    %557 = vmatprep.subr.mxu0 0.0
    %558 = vmatpush1.msra.mxu0 0.0
    %559 = vmatprep.subr.mxu0 0.0
    %560 = vmatpush1.msra.mxu0 0.0
    %561 = vmatprep.subr.mxu0 0.0
    %562 = vmatpush1.msra.mxu0 0.0
    %563 = vmatprep.subr.mxu0 0.0
    %564 = vmatpush1.msra.mxu0 0.0
    %565 = vmatprep.subr.mxu0 0.0
    %566 = vmatpush1.msra.mxu0 0.0
    %567 = vmatprep.subr.mxu0 0.0
    %568 = vmatpush1.msra.mxu0 0.0
    %569 = vmatprep.subr.mxu0 0.0
    %570 = vmatpush1.msra.mxu0 0.0
    %571 = vmatprep.subr.mxu0 0.0
    %572 = vmatpush1.msra.mxu0 0.0
    %573 = vmatprep.subr.mxu0 0.0
    %574 = vmatpush1.msra.mxu0 0.0
    %575 = vmatprep.subr.mxu0 0.0
    %576 = vmatpush1.msra.mxu0 0.0
    %577 = vmatprep.subr.mxu0 0.0
    %578 = vmatpush1.msra.mxu0 0.0
    %579 = vmatprep.subr.mxu0 0.0
    %580 = vmatpush1.msra.mxu0 0.0
    %581 = vmatprep.subr.mxu0 0.0
    %582 = vmatpush1.msra.mxu0 0.0
    %583 = vmatprep.mubr.f32.mxu0 0.0
    %584 = vmatmul.mubr.f32.gmra.mrb[0].mxu0 %v495
    %v585 = vpop.f32.mrb[0].mxu0
    %v586 = vadd.f32 %v517, %v585
    %v587 = vpop.f32.mrb[0].mxu0
    %588 = vdwg.mxu0
    %v589 = vmax.f32 %v586, 0.0
    %v590 = vld [vmem:[#allocation8] sm:$0xff]
    %v591 = vld [vmem:[#allocation8 + $0x8] sm:$0xff]
    %v592 = vld [vmem:[#allocation8 + $0x10] sm:$0xff]
    %v593 = vld [vmem:[#allocation8 + $0x18] sm:$0xff]
    %v594 = vld [vmem:[#allocation8 + $0x20] sm:$0xff]
    %v595 = vld [vmem:[#allocation8 + $0x28] sm:$0xff]
    %v596 = vld [vmem:[#allocation8 + $0x30] sm:$0xff]
    %v597 = vld [vmem:[#allocation8 + $0x38] sm:$0xff]
    %v598 = vld [vmem:[#allocation8 + $0x40] sm:$0xff]
    %v599 = vld [vmem:[#allocation8 + $0x48] sm:$0xff]
    %v600 = vld [vmem:[#allocation8 + $0x50] sm:$0xff]
    %v601 = vld [vmem:[#allocation8 + $0x58] sm:$0xff]
    %v602 = vld [vmem:[#allocation8 + $0x60] sm:$0xff]
    %v603 = vld [vmem:[#allocation8 + $0x68] sm:$0xff]
    %v604 = vld [vmem:[#allocation8 + $0x70] sm:$0xff]
    %v605 = vld [vmem:[#allocation8 + $0x78] sm:$0xff]
    %v606 = vld [vmem:[%s6] sm:$0x1]
    %v608 = vlaneseq
    %v609 = vshrl.u32 %v608, 7
    %v610 = vsub.s32 0, %v609
    %v611 = vrot.slane %v606, %v610
    %613 = vmatprep.subr.mxu0 0.0
    %614 = vmatpush1.msra.mxu0 %v590
    %615 = vmatprep.subr.mxu0 0.0
    %616 = vmatpush1.msra.mxu0 %v591
    %617 = vmatprep.subr.mxu0 0.0
    %618 = vmatpush1.msra.mxu0 %v592
    %619 = vmatprep.subr.mxu0 0.0
    %620 = vmatpush1.msra.mxu0 %v593
    %621 = vmatprep.subr.mxu0 0.0
    %622 = vmatpush1.msra.mxu0 %v594
    %623 = vmatprep.subr.mxu0 0.0
    %624 = vmatpush1.msra.mxu0 %v595
    %625 = vmatprep.subr.mxu0 0.0
    %626 = vmatpush1.msra.mxu0 %v596
    %627 = vmatprep.subr.mxu0 0.0
    %628 = vmatpush1.msra.mxu0 %v597
    %629 = vmatprep.subr.mxu0 0.0
    %630 = vmatpush1.msra.mxu0 %v598
    %631 = vmatprep.subr.mxu0 0.0
    %632 = vmatpush1.msra.mxu0 %v599
    %633 = vmatprep.subr.mxu0 0.0
    %634 = vmatpush1.msra.mxu0 %v600
    %635 = vmatprep.subr.mxu0 0.0
    %636 = vmatpush1.msra.mxu0 %v601
    %637 = vmatprep.subr.mxu0 0.0
    %638 = vmatpush1.msra.mxu0 %v602
    %639 = vmatprep.subr.mxu0 0.0
    %640 = vmatpush1.msra.mxu0 %v603
    %641 = vmatprep.subr.mxu0 0.0
    %642 = vmatpush1.msra.mxu0 %v604
    %643 = vmatprep.subr.mxu0 0.0
    %644 = vmatpush1.msra.mxu0 %v605
    %645 = vmatprep.subr.mxu0 0.0
    %646 = vmatpush1.msra.mxu0 0.0
    %647 = vmatprep.subr.mxu0 0.0
    %648 = vmatpush1.msra.mxu0 0.0
    %649 = vmatprep.subr.mxu0 0.0
    %650 = vmatpush1.msra.mxu0 0.0
    %651 = vmatprep.subr.mxu0 0.0
    %652 = vmatpush1.msra.mxu0 0.0
    %653 = vmatprep.subr.mxu0 0.0
    %654 = vmatpush1.msra.mxu0 0.0
    %655 = vmatprep.subr.mxu0 0.0
    %656 = vmatpush1.msra.mxu0 0.0
    %657 = vmatprep.subr.mxu0 0.0
    %658 = vmatpush1.msra.mxu0 0.0
    %659 = vmatprep.subr.mxu0 0.0
    %660 = vmatpush1.msra.mxu0 0.0
    %661 = vmatprep.subr.mxu0 0.0
    %662 = vmatpush1.msra.mxu0 0.0
    %663 = vmatprep.subr.mxu0 0.0
    %664 = vmatpush1.msra.mxu0 0.0
    %665 = vmatprep.subr.mxu0 0.0
    %666 = vmatpush1.msra.mxu0 0.0
    %667 = vmatprep.subr.mxu0 0.0
    %668 = vmatpush1.msra.mxu0 0.0
    %669 = vmatprep.subr.mxu0 0.0
    %670 = vmatpush1.msra.mxu0 0.0
    %671 = vmatprep.subr.mxu0 0.0
    %672 = vmatpush1.msra.mxu0 0.0
    %673 = vmatprep.subr.mxu0 0.0
    %674 = vmatpush1.msra.mxu0 0.0
    %675 = vmatprep.subr.mxu0 0.0
    %676 = vmatpush1.msra.mxu0 0.0
    %677 = vmatprep.mubr.f32.mxu0 0.0
    %678 = vmatmul.mubr.f32.gmra.mrb[0].mxu0 %v589
    %v679 = vpop.f32.mrb[0].mxu0
    %v680 = vadd.f32 %v611, %v679
    %v681 = vpop.f32.mrb[0].mxu0
    %682 = vdwg.mxu0
    %v683 = vmax.f32 %v680, 0.0
    %v684 = vld [vmem:[#allocation10] sm:$0xff]
    %v685 = vld [vmem:[#allocation10 + $0x8] sm:$0xff]
    %v686 = vld [vmem:[#allocation10 + $0x10] sm:$0xff]
    %v687 = vld [vmem:[#allocation10 + $0x18] sm:$0xff]
    %v688 = vld [vmem:[#allocation10 + $0x20] sm:$0xff]
    %v689 = vld [vmem:[#allocation10 + $0x28] sm:$0xff]
    %v690 = vld [vmem:[#allocation10 + $0x30] sm:$0xff]
    %v691 = vld [vmem:[#allocation10 + $0x38] sm:$0xff]
    %v692 = vld [vmem:[#allocation10 + $0x40] sm:$0xff]
    %v693 = vld [vmem:[#allocation10 + $0x48] sm:$0xff]
    %v694 = vld [vmem:[#allocation10 + $0x50] sm:$0xff]
    %v695 = vld [vmem:[#allocation10 + $0x58] sm:$0xff]
    %v696 = vld [vmem:[#allocation10 + $0x60] sm:$0xff]
    %v697 = vld [vmem:[#allocation10 + $0x68] sm:$0xff]
    %v698 = vld [vmem:[#allocation10 + $0x70] sm:$0xff]
    %v699 = vld [vmem:[#allocation10 + $0x78] sm:$0xff]
    %v700 = vld [vmem:[%s8] sm:$0x1]
    %v702 = vlaneseq
    %v703 = vshrl.u32 %v702, 7
    %v704 = vsub.s32 0, %v703
    %v705 = vrot.slane %v700, %v704
    %707 = vmatprep.subr.mxu0 0.0
    %708 = vmatpush1.msra.mxu0 %v684
    %709 = vmatprep.subr.mxu0 0.0
    %710 = vmatpush1.msra.mxu0 %v685
    %711 = vmatprep.subr.mxu0 0.0
    %712 = vmatpush1.msra.mxu0 %v686
    %713 = vmatprep.subr.mxu0 0.0
    %714 = vmatpush1.msra.mxu0 %v687
    %715 = vmatprep.subr.mxu0 0.0
    %716 = vmatpush1.msra.mxu0 %v688
    %717 = vmatprep.subr.mxu0 0.0
    %718 = vmatpush1.msra.mxu0 %v689
    %719 = vmatprep.subr.mxu0 0.0
    %720 = vmatpush1.msra.mxu0 %v690
    %721 = vmatprep.subr.mxu0 0.0
    %722 = vmatpush1.msra.mxu0 %v691
    %723 = vmatprep.subr.mxu0 0.0
    %724 = vmatpush1.msra.mxu0 %v692
    %725 = vmatprep.subr.mxu0 0.0
    %726 = vmatpush1.msra.mxu0 %v693
    %727 = vmatprep.subr.mxu0 0.0
    %728 = vmatpush1.msra.mxu0 %v694
    %729 = vmatprep.subr.mxu0 0.0
    %730 = vmatpush1.msra.mxu0 %v695
    %731 = vmatprep.subr.mxu0 0.0
    %732 = vmatpush1.msra.mxu0 %v696
    %733 = vmatprep.subr.mxu0 0.0
    %734 = vmatpush1.msra.mxu0 %v697
    %735 = vmatprep.subr.mxu0 0.0
    %736 = vmatpush1.msra.mxu0 %v698
    %737 = vmatprep.subr.mxu0 0.0
    %738 = vmatpush1.msra.mxu0 %v699
    %739 = vmatprep.subr.mxu0 0.0
    %740 = vmatpush1.msra.mxu0 0.0
    %741 = vmatprep.subr.mxu0 0.0
    %742 = vmatpush1.msra.mxu0 0.0
    %743 = vmatprep.subr.mxu0 0.0
    %744 = vmatpush1.msra.mxu0 0.0
    %745 = vmatprep.subr.mxu0 0.0
    %746 = vmatpush1.msra.mxu0 0.0
    %747 = vmatprep.subr.mxu0 0.0
    %748 = vmatpush1.msra.mxu0 0.0
    %749 = vmatprep.subr.mxu0 0.0
    %750 = vmatpush1.msra.mxu0 0.0
    %751 = vmatprep.subr.mxu0 0.0
    %752 = vmatpush1.msra.mxu0 0.0
    %753 = vmatprep.subr.mxu0 0.0
    %754 = vmatpush1.msra.mxu0 0.0
    %755 = vmatprep.subr.mxu0 0.0
    %756 = vmatpush1.msra.mxu0 0.0
    %757 = vmatprep.subr.mxu0 0.0
    %758 = vmatpush1.msra.mxu0 0.0
    %759 = vmatprep.subr.mxu0 0.0
    %760 = vmatpush1.msra.mxu0 0.0
    %761 = vmatprep.subr.mxu0 0.0
    %762 = vmatpush1.msra.mxu0 0.0
    %763 = vmatprep.subr.mxu0 0.0
    %764 = vmatpush1.msra.mxu0 0.0
    %765 = vmatprep.subr.mxu0 0.0
    %766 = vmatpush1.msra.mxu0 0.0
    %767 = vmatprep.subr.mxu0 0.0
    %768 = vmatpush1.msra.mxu0 0.0
    %769 = vmatprep.subr.mxu0 0.0
    %770 = vmatpush1.msra.mxu0 0.0
    %771 = vmatprep.mubr.f32.mxu0 0.0
    %772 = vmatmul.mubr.f32.gmra.mrb[0].mxu0 %v683
    %v773 = vpop.f32.mrb[0].mxu0
    %v774 = vadd.f32 %v705, %v773
    %v775 = vpop.f32.mrb[0].mxu0
    %776 = vdwg.mxu0
    %777 = vst [vmem:[#allocation11] sm:$0xff] %v774
    // Predicated region
    $region58: #{tpu_custom_call.1} parent=1 // pred_check
      _
    $region59: #{tpu_custom_call.1} parent=1 // pred_check_branch
      %779 = sbr.rel (0) target = $region61
    $region60: #{tpu_custom_call.1} parent=1 // pred_region
      %s781 = ssub.s32 128, 128
      %782 = vsyncadd [#allocation4], %s781
      %s784 = sshll.u32 [#allocation11], 4
      %s785 = int_to_ptr.vmem [resolvable:$true] %s784
      %787 = dma.vmem_to_hbm [thread:$0]  %s785, 128, %s9, [#allocation4]
    $region61: #{tpu_custom_call.1} parent=1 // pred_fallthru
      _
    // Predicated region
    $region62: #{tpu_custom_call.1} parent=1 // pred_check
      _
    $region63: #{tpu_custom_call.1} parent=1 // pred_check_branch
      %789 = sbr.rel (0) target = $region65
    $region64: #{tpu_custom_call.1} parent=1 // pred_region
      %790 = dma.done [#allocation4], 128
    $region65: #{tpu_custom_call.1} parent=1 // pred_fallthru
      _
    %791 = vsyncpa [#allocation3], 1
    %792 = vsyncpa [#allocation6], 1
    %793 = vsyncpa [#allocation9], 1
    %794 = vsyncpa [#allocation4], 1

</llo_original>
